<compile_context>
chip_gen: v7x
topology: tpu7x:2x2x1
jax: 0.10.0
libtpu: 0.0.40
codegen_flags: <defaults>
</compile_context>

<pallas_src>
import functools
from typing import NamedTuple

import jax
import jax.numpy as jnp
from jax.experimental import pallas as pl
from jax.experimental.pallas import tpu as pltpu

_MiB = 1024 * 1024
_LANE = 128
_SUBLANE = 8
_K_SINGLE_PASS_MAX = 8192  # contract ninp in a single pass up to this size


def _round_up(x, m):
    return ((x + m - 1) // m) * m


def _vmem_budget_bytes():
    """Usable VMEM budget for kernel tiles (generation-aware, with headroom)."""
    try:
        cap = int(pltpu.get_tpu_info().vmem_capacity_bytes)
    except Exception:
        cap = 64 * _MiB  # conservative default (v7x per-TensorCore VMEM)
    # Leave headroom for compiler-internal scratch; never request more than
    # ~100 MiB even on 128 MiB parts, and ~48 MiB on 64 MiB parts.
    return min(cap * 3 // 4, 100 * _MiB)


def _est_vmem_bytes(tm, tn, tk, cdt_size, out_size, k_tiled):
    """Double-buffered tile footprint (+ f32 accumulator scratch if K-tiled)."""
    per_buf = tm * tk * cdt_size + tk * tn * cdt_size + tn * 4 + tm * tn * out_size
    acc = tm * tn * 4 if k_tiled else 0
    return 2 * per_buf + acc


def _pick_k_tile(ninp):
    if ninp <= _K_SINGLE_PASS_MAX:
        return ninp
    for tk in (2048, 1024, 512, 256, 128):
        if ninp % tk == 0:
            return tk
    return ninp  # no clean lane-aligned divisor: stay single-pass


def _pick_tn(ninp, ntoken, cdt_size, budget):
    """Vocab (lane) tile, chosen once at parameter-prep time."""
    tk = _pick_k_tile(ninp)
    k_tiled = tk != ninp
    n_full = _round_up(ntoken, _LANE)
    tm_nom = 512 if budget >= 64 * _MiB else 256
    for tn in (2048, 1024, 512, 256, 128):
        if tn > n_full:
            continue
        if _est_vmem_bytes(tm_nom, tn, tk, cdt_size, 4, k_tiled) + 4 * _MiB <= budget:
            return tn, tk
    return min(128, n_full), tk


def _pick_tm(M, tn, tk, cdt_size, out_size, budget, k_tiled):
    """Row tile (B*S axis), chosen per call (depends on M and out dtype)."""
    m_cap = _round_up(max(M, 1), _SUBLANE)
    for tm in (1024, 512, 256, 128, 64, 32, 16, 8):
        if tm > m_cap:
            continue
        if _est_vmem_bytes(tm, tn, tk, cdt_size, out_size, k_tiled) + 4 * _MiB <= budget:
            return tm
    return 8


class DecoderParams(NamedTuple):
    """Vocab-projection parameters prepared ONCE at init (not per forward)."""
    w: jax.Array   # (ninp, n_pad)  compute dtype, pre-transposed, lane-padded
    b: jax.Array   # (1, n_pad)     float32, padded
    ntoken: int
    ninp: int
    tn: int        # vocab (lane) tile
    tk: int        # contraction tile (== ninp when single-pass)


def prepare_decoder_params(weight, bias, *, compute_dtype=jnp.bfloat16):
    """One-time parameter prep.

    Casts the weight to the MXU compute dtype, pre-transposes it to
    (ninp, ntoken) so the kernel does a plain NN matmul (no in-kernel `.T`),
    and pads the vocab axis to a multiple of the vocab tile so every output
    store is an unmasked lane-dense vst.
    """
    ntoken, ninp = weight.shape
    cdt = jnp.dtype(compute_dtype)
    budget = _vmem_budget_bytes()
    tn, tk = _pick_tn(ninp, ntoken, cdt.itemsize, budget)
    n_pad = _round_up(ntoken, tn)

    w = jnp.asarray(weight).astype(cdt).T                       # (ninp, ntoken)
    b = jnp.asarray(bias).astype(jnp.float32).reshape(1, ntoken)
    if n_pad != ntoken:
        # Zero weight columns => padded logits are exactly `bias_pad = 0`,
        # sliced off in the wrapper.
        w = jnp.pad(w, ((0, 0), (0, n_pad - ntoken)))
        b = jnp.pad(b, ((0, 0), (0, n_pad - ntoken)))
    return DecoderParams(w=w, b=b, ntoken=ntoken, ninp=ninp, tn=tn, tk=tk)


def _decoder_kernel(x_ref, w_ref, b_ref, o_ref):
    # x_ref: (tm, ninp) cdt | w_ref: (ninp, tn) cdt | b_ref: (1, tn) f32
    # Weight is pre-transposed at init -> plain NN matmul on the MXU.
    acc = jnp.dot(x_ref[...], w_ref[...], preferred_element_type=jnp.float32)
    o_ref[...] = (acc + b_ref[...]).astype(o_ref.dtype)


def _decoder_kernel_ktiled(x_ref, w_ref, b_ref, o_ref, acc_ref):
    # K (contraction) is the innermost grid axis: f32 accumulator scratch,
    # zero-init at k == 0, bias + cast + store at the last k.
    k = pl.program_id(2)

    @pl.when(k == 0)
    def _():
        acc_ref[...] = jnp.zeros_like(acc_ref)

    acc_ref[...] += jnp.dot(x_ref[...], w_ref[...],
                            preferred_element_type=jnp.float32)

    @pl.when(k == pl.num_programs(2) - 1)
    def _():
        o_ref[...] = (acc_ref[...] + b_ref[...]).astype(o_ref.dtype)


def decoder_forward(inp, params: DecoderParams, *, out_dtype=None):
    """inp: (S, B, ninp) -> (B, S, ntoken) == nn.Linear(ninp, ntoken)(inp).permute(1,0,2)."""
    S, B, ninp = inp.shape
    assert ninp == params.ninp, "input feature dim does not match prepared params"
    ntoken, tn, tk = params.ntoken, params.tn, params.tk
    out_dtype = jnp.dtype(out_dtype) if out_dtype is not None else jnp.dtype(inp.dtype)
    cdt = params.w.dtype
    n_pad = params.w.shape[1]
    k_tiled = tk != ninp

    # Fold the permute into the (needed anyway) bf16 staging cast of x: a
    # single read-f32/write-bf16 pass over x, same HBM bytes as a cast-only
    # staging op.  The kernel then emits logits directly in (B,S,·) row order.
    M = B * S
    x = jnp.transpose(inp, (1, 0, 2)).reshape(M, ninp).astype(cdt)

    budget = _vmem_budget_bytes()
    tm = _pick_tm(M, tn, tk, cdt.itemsize, out_dtype.itemsize, budget, k_tiled)
    m_pad = _round_up(M, tm)
    if m_pad != M:
        x = jnp.pad(x, ((0, m_pad - M), (0, 0)))

    m_t, n_t, k_t = m_pad // tm, n_pad // tn, ninp // tk

    # Streamed-bytes-aware loop order (single-pass-K case): the outer operand
    # is read once from HBM, the inner-loop operand is re-read (outer extent)
    # times -> put the cheaper re-read on the inner axis.
    x_bytes = m_pad * ninp * cdt.itemsize
    w_bytes = n_pad * ninp * cdt.itemsize
    n_outer = x_bytes * (n_t - 1) <= w_bytes * (m_t - 1)

    if k_tiled:
        grid = (n_t, m_t, k_t) if n_outer else (m_t, n_t, k_t)
        if n_outer:
            x_map = lambda n, m, k: (m, k)
            w_map = lambda n, m, k: (k, n)
            b_map = lambda n, m, k: (0, n)
            o_map = lambda n, m, k: (m, n)
        else:
            x_map = lambda m, n, k: (m, k)
            w_map = lambda m, n, k: (k, n)
            b_map = lambda m, n, k: (0, n)
            o_map = lambda m, n, k: (m, n)
        kernel = _decoder_kernel_ktiled
        scratch = [pltpu.VMEM((tm, tn), jnp.float32)]
        semantics = ("parallel", "parallel", "arbitrary")
        streamed = x_bytes * n_t + w_bytes * m_t
    else:
        grid = (n_t, m_t) if n_outer else (m_t, n_t)
        if n_outer:
            x_map = lambda n, m: (m, 0)
            w_map = lambda n, m: (0, n)
            b_map = lambda n, m: (0, n)
            o_map = lambda n, m: (m, n)
        else:
            x_map = lambda m, n: (m, 0)
            w_map = lambda m, n: (0, n)
            b_map = lambda m, n: (0, n)
            o_map = lambda m, n: (m, n)
        kernel = _decoder_kernel
        scratch = []
        semantics = ("parallel", "parallel")
        streamed = (x_bytes * n_t + w_bytes) if n_outer else (x_bytes + w_bytes * m_t)

    # Accurate scoped-VMEM request: footprint already includes double
    # buffering; just add a little compiler headroom and clamp to the budget.
    est = _est_vmem_bytes(tm, tn, tk, cdt.itemsize, out_dtype.itemsize, k_tiled)
    vmem_limit = int(min(budget, max(est + 4 * _MiB, 8 * _MiB)))

    cost = pl.CostEstimate(
        flops=2 * m_pad * n_pad * ninp,
        bytes_accessed=int(streamed + n_pad * 4 + m_pad * n_pad * out_dtype.itemsize),
        transcendentals=0,
    )

    out2d = pl.pallas_call(
        kernel,
        out_shape=jax.ShapeDtypeStruct((m_pad, n_pad), out_dtype),
        grid_spec=pltpu.PrefetchScalarGridSpec(
            num_scalar_prefetch=0,
            grid=grid,
            in_specs=[
                pl.BlockSpec((tm, tk), x_map),   # activation rows
                pl.BlockSpec((tk, tn), w_map),   # weight tile (pre-transposed NN)
                pl.BlockSpec((1, tn), b_map),    # bias tile
            ],
            out_specs=pl.BlockSpec((tm, tn), o_map),
            scratch_shapes=scratch,
        ),
        compiler_params=pltpu.CompilerParams(
            dimension_semantics=semantics,
            vmem_limit_bytes=vmem_limit,
        ),
        cost_estimate=cost,
    )(x, params.w, params.b)

    out2d = out2d[:M, :ntoken]            # drop padding (no-op when aligned)
    return out2d.reshape(B, S, ntoken)

    # TODO(synk): for maximum HBM savings fuse the downstream log-softmax /
    # loss into this kernel so full-precision logits never hit HBM.


if __name__ == "__main__":
    # Small shapes consistent with the module: seq=8, batch=4, ninp=32, ntoken=64
    S, B, ninp, ntoken = 8, 4, 32, 64

    key = jax.random.PRNGKey(0)
    k_inp, k_w = jax.random.split(key)

    inp = jax.random.normal(k_inp, (S, B, ninp), dtype=jnp.float32)

    # Deterministic init mirroring Decoder.init_weights():
    #   weight ~ U(-0.1, 0.1), bias = 0
    initrange = 0.1
    weight = jax.random.uniform(
        k_w, (ntoken, ninp), dtype=jnp.float32,
        minval=-initrange, maxval=initrange)
    bias = jnp.zeros((ntoken,), dtype=jnp.float32)

    # One-time parameter prep (cast + transpose + pad), then a jitted forward
    # that closes over the prepared params (ints stay static, arrays constant).
    params = prepare_decoder_params(weight, bias)
    fwd = jax.jit(functools.partial(decoder_forward, params=params))

    out = jax.block_until_ready(fwd(inp))
    assert out.shape == (B, S, ntoken)
    assert out.dtype == inp.dtype

    # Reference with the same bf16 operand rounding as the kernel's MXU path
    # (f32 accumulation), same math as nn.Linear + permute(1, 0, 2).
    x_bf = inp.astype(jnp.bfloat16).astype(jnp.float32)
    w_bf = weight.astype(jnp.bfloat16).astype(jnp.float32)
    ref = jnp.transpose(x_bf @ w_bf.T + bias, (1, 0, 2))
    assert jnp.allclose(out, ref, atol=1e-4, rtol=1e-4)

    # Sanity check against the pure-f32 reference (bf16 rounding tolerance).
    ref_f32 = jnp.transpose(inp @ weight.T + bias, (1, 0, 2))
    assert jnp.allclose(out, ref_f32, atol=3e-2, rtol=3e-2)

    print("KERNEL_OK")
</pallas_src>

<mosaic_0001>
module attributes {stable_mosaic.version = 11 : i64} {
  func.func @_decoder_kernel(%arg0: i32, %arg1: i32, %arg2: memref<32x32xbf16, #tpu.memory_space<vmem>>, %arg3: memref<32x128xbf16, #tpu.memory_space<vmem>>, %arg4: memref<1x128xf32, #tpu.memory_space<vmem>>, %arg5: memref<32x128xf32, #tpu.memory_space<vmem>>) attributes {dimension_semantics = [#tpu.dimension_semantics<parallel>, #tpu.dimension_semantics<parallel>], iteration_bounds = array<i64: 1, 1>, scalar_prefetch = 0 : i64, scratch_operands = 0 : i64, tpu.core_type = #tpu.core_type<tc>, window_params = [{transform_indices = @transform_0, window_bounds = array<i64: 32, 32>}, {transform_indices = @transform_1, window_bounds = array<i64: 32, 128>}, {transform_indices = @transform_2, window_bounds = array<i64: 1, 128>}, {transform_indices = @transform_3, window_bounds = array<i64: 32, 128>}]} {
    %c0 = arith.constant 0 : index
    %c0_0 = arith.constant 0 : index
    %0 = vector.load %arg2[%c0, %c0_0] : memref<32x32xbf16, #tpu.memory_space<vmem>>, vector<32x32xbf16>
    %c0_1 = arith.constant 0 : index
    %c0_2 = arith.constant 0 : index
    %1 = vector.load %arg3[%c0_1, %c0_2] : memref<32x128xbf16, #tpu.memory_space<vmem>>, vector<32x128xbf16>
    %cst = arith.constant dense<0.000000e+00> : vector<32x128xf32>
    %2 = tpu.matmul %0, %1, %cst {dimension_numbers = #tpu.dot_dimension_numbers<[1], [0], [0], [1], [0, 0, 1, 1], [], []>} : vector<32x32xbf16>, vector<32x128xbf16>, vector<32x128xf32> -> vector<32x128xf32>
    %c0_3 = arith.constant 0 : index
    %c0_4 = arith.constant 0 : index
    %3 = vector.load %arg4[%c0_3, %c0_4] : memref<1x128xf32, #tpu.memory_space<vmem>>, vector<1x128xf32>
    %4 = vector.broadcast %3 : vector<1x128xf32> to vector<32x128xf32>
    %5 = arith.addf %2, %4 : vector<32x128xf32>
    %c0_5 = arith.constant 0 : index
    %c0_6 = arith.constant 0 : index
    %6 = vector.load %arg5[%c0_5, %c0_6] : memref<32x128xf32, #tpu.memory_space<vmem>>, vector<32x128xf32>
    tpu.vector_store %arg5[%c0_5, %c0_6], %5 {strides = array<i32>} : memref<32x128xf32, #tpu.memory_space<vmem>>, vector<32x128xf32>,
    return
  }
  func.func @transform_0(%arg0: i32, %arg1: i32) -> (i32, i32) {
    %c0_i32 = arith.constant 0 : i32
    %c0_i32_0 = arith.constant 0 : i32
    return %arg1, %c0_i32 : i32, i32
  }
  func.func @transform_1(%arg0: i32, %arg1: i32) -> (i32, i32) {
    %c0_i32 = arith.constant 0 : i32
    %c0_i32_0 = arith.constant 0 : i32
    return %c0_i32, %arg0 : i32, i32
  }
  func.func @transform_2(%arg0: i32, %arg1: i32) -> (i32, i32) {
    %c0_i32 = arith.constant 0 : i32
    %c0_i32_0 = arith.constant 0 : i32
    return %c0_i32, %arg0 : i32, i32
  }
  func.func @transform_3(%arg0: i32, %arg1: i32) -> (i32, i32) {
    %c0_i32 = arith.constant 0 : i32
    return %arg1, %arg0 : i32, i32
  }
}

</mosaic_0001>

<llo_original>
// kernel: decoder_forward.1
$region0: #{decoder_forward.1}
  #allocation0 [shape = 'u32[]', space=smem, size = 0x4, offset = 0x4, fixed_abs, tag = 'smem constant byte address 0x4 - core index']
  #allocation1 [shape = 'u32[144,128]{1,0:T(1,128)}', space=vmem, size = 0x12000, scoped, tag = 'internal scratch']
  %s0 = inlined_call_operand.vmem [shape: bf16[32,32], index: 0, kind: input, shape index: {}]
  %s1 = inlined_call_operand.vmem [shape: bf16[32,128], index: 1, kind: input, shape index: {}]
  %s2 = inlined_call_operand.vmem [shape: f32[1,128], index: 2, kind: input, shape index: {}]
  %s3 = inlined_call_operand.vmem [shape: f32[32,128], index: 3, kind: output, shape index: {}]
  %s4 = sld [smem:[#allocation0]]
  $region22: #{decoder_forward.1} parent=0
    _
  %s6 = ssub.s32 1, %s4
  %s7 = scalar_select 0, %s6, %s4
  // Predicated region
  $region2: #{decoder_forward.1} parent=0 // pred_check
    _
  $region3: #{decoder_forward.1} parent=0 // pred_check_branch
    %9 = sbr.rel (0) target = $region5
  $region4: #{decoder_forward.1} parent=0 // pred_region
    _
  $region5: #{decoder_forward.1} parent=0 // pred_fallthru
    _
  // Predicated region
  $region6: #{decoder_forward.1} parent=0 // pred_check
    _
  $region7: #{decoder_forward.1} parent=0 // pred_check_branch
    %11 = sbr.rel (0) target = $region9
  $region8: #{decoder_forward.1} parent=0 // pred_region
    _
  $region9: #{decoder_forward.1} parent=0 // pred_fallthru
    _
  // Predicated region
  $region10: #{decoder_forward.1} parent=0 // pred_check
    _
  $region11: #{decoder_forward.1} parent=0 // pred_check_branch
    %13 = sbr.rel (0) target = $region13
  $region12: #{decoder_forward.1} parent=0 // pred_region
    _
  $region13: #{decoder_forward.1} parent=0 // pred_fallthru
    _
  %v15 = vld [vmem:[%s0] sm:$0xf]
  %v16 = vld [vmem:[%s0 + $0x4] sm:$0xf]
  %v17 = vld [vmem:[%s0 + $0x8] sm:$0xf]
  %v18 = vld [vmem:[%s0 + $0xc] sm:$0xf]
  %v19 = vld [vmem:[%s1] sm:$0xf]
  %v20 = vld [vmem:[%s1 + $0x4] sm:$0xf]
  %v21 = vld [vmem:[%s1 + $0x8] sm:$0xf]
  %v22 = vld [vmem:[%s1 + $0xc] sm:$0xf]
  %v23 = vld [vmem:[%s2] sm:$0x1]
  %v25 = vlaneseq
  %v26 = vshrl.u32 %v25, 7
  %v27 = vsub.s32 0, %v26
  %v28 = vrot.slane %v23, %v27
  %v34 = vunpack.c.l.b16 %v15
  %v35 = vunpack.c.l.b16 %v16
  %v36 = vunpack.c.l.b16 %v17
  %v37 = vunpack.c.l.b16 %v18
  %v38 = vpack.c.b16 %v35, %v34
  %v39 = vpack.c.b16 %v37, %v36
  %v44 = vunpack.c.l.b16 %v19
  %v45 = vunpack.c.l.b16 %v20
  %v46 = vunpack.c.l.b16 %v21
  %v47 = vunpack.c.l.b16 %v22
  %v48 = vpack.c.b16 %v45, %v44
  %v49 = vpack.c.b16 %v47, %v46
  %vm52 = vcmask 261120
  %v54 = vsel %vm52, %v38, 0
  %v57 = vsel %vm52, %v39, 0
  %59 = vmatprep.subr.bf16.mxu0 0
  %60 = vmatpush1.bf16.msra.mxu0 %v48
  %61 = vmatprep.subr.bf16.mxu0 0
  %62 = vmatpush1.bf16.msra.mxu0 %v49
  %63 = vmatprep.subr.bf16.mxu0 0
  %64 = vmatpush1.bf16.msra.mxu0 0
  %65 = vmatprep.subr.bf16.mxu0 0
  %66 = vmatpush1.bf16.msra.mxu0 0
  %67 = vmatprep.subr.bf16.mxu0 0
  %68 = vmatpush1.bf16.msra.mxu0 0
  %69 = vmatprep.subr.bf16.mxu0 0
  %70 = vmatpush1.bf16.msra.mxu0 0
  %71 = vmatprep.subr.bf16.mxu0 0
  %72 = vmatpush1.bf16.msra.mxu0 0
  %73 = vmatprep.subr.bf16.mxu0 0
  %74 = vmatpush1.bf16.msra.mxu0 0
  %75 = vmatprep.subr.bf16.mxu0 0
  %76 = vmatpush1.bf16.msra.mxu0 0
  %77 = vmatprep.subr.bf16.mxu0 0
  %78 = vmatpush1.bf16.msra.mxu0 0
  %79 = vmatprep.subr.bf16.mxu0 0
  %80 = vmatpush1.bf16.msra.mxu0 0
  %81 = vmatprep.subr.bf16.mxu0 0
  %82 = vmatpush1.bf16.msra.mxu0 0
  %83 = vmatprep.subr.bf16.mxu0 0
  %84 = vmatpush1.bf16.msra.mxu0 0
  %85 = vmatprep.subr.bf16.mxu0 0
  %86 = vmatpush1.bf16.msra.mxu0 0
  %87 = vmatprep.subr.bf16.mxu0 0
  %88 = vmatpush1.bf16.msra.mxu0 0
  %89 = vmatprep.subr.bf16.mxu0 0
  %90 = vmatpush1.bf16.msra.mxu0 0
  %91 = vmatprep.mubr.bf16.mxu0 0
  %92 = vmatmul.mubr.bf16.gmra.mrb[0].mxu0 %v54
  %v93 = vpop.f32.mrb[0].mxu0
  %v94 = vadd.f32 %v28, %v93
  %v95 = vpop.f32.mrb[0].mxu0
  %v96 = vpop.f32.mrb[0].mxu0
  %v97 = vadd.f32 %v28, %v96
  %v98 = vpop.f32.mrb[0].mxu0
  %99 = vmatprep.mubr.bf16.mxu0 0
  %100 = vmatmul.mubr.bf16.gmra.mrb[0].mxu0 %v57
  %v101 = vpop.f32.mrb[0].mxu0
  %v102 = vadd.f32 %v28, %v101
  %v103 = vpop.f32.mrb[0].mxu0
  %v104 = vpop.f32.mrb[0].mxu0
  %v105 = vadd.f32 %v28, %v104
  %v106 = vpop.f32.mrb[0].mxu0
  %107 = vdwg.mxu0
  %108 = vst [vmem:[%s3] sm:$0xff] %v94
  %109 = vst [vmem:[%s3 + $0x8] sm:$0xff] %v97
  %110 = vst [vmem:[%s3 + $0x10] sm:$0xff] %v102
  %111 = vst [vmem:[%s3 + $0x18] sm:$0xff] %v105
  // Predicated region
  $region14: #{decoder_forward.1} parent=0 // pred_check
    _
  $region15: #{decoder_forward.1} parent=0 // pred_check_branch
    %113 = sbr.rel (0) target = $region17
  $region16: #{decoder_forward.1} parent=0 // pred_region
    _
  $region17: #{decoder_forward.1} parent=0 // pred_fallthru
    _
  // Predicated region
  $region18: #{decoder_forward.1} parent=0 // pred_check
    _
  $region19: #{decoder_forward.1} parent=0 // pred_check_branch
    %115 = sbr.rel (0) target = $region21
  $region20: #{decoder_forward.1} parent=0 // pred_region
    _
  $region21: #{decoder_forward.1} parent=0 // pred_fallthru
    _

</llo_original>
